<compile_context>
chip_gen: v6e
topology: v6e:2x2x1
jax: 0.10.0
libtpu: 0.0.40
codegen_flags: <defaults>
</compile_context>

<pallas_src>
import functools

import jax
import jax.numpy as jnp
from jax import lax
from jax.experimental import pallas as pl
from jax.experimental.pallas import tpu as pltpu

LN_EPS = 1e-5                    # torch.nn.LayerNorm default
_SUBLANE = 8                     # f32 sublane granularity
_X_TILE_TARGET_BYTES = 2 << 20   # ~2 MiB x tile per grid step
_MIN_GRID_STEPS = 4              # keep >=4 steps (>=2 per v7x core) when tiling


def _round_up(n, m):
    return ((n + m - 1) // m) * m


def _round_dn(n, m):
    return (n // m) * m


def _vmem_sizes():
    """Generation-aware (limit, budget) in bytes.

    limit  -> vmem_limit_bytes handed to the compiler (~3/4 of physical VMEM:
              v5e/v6e 128 MiB -> 96 MiB, v7x 64 MiB -> 48 MiB).
    budget -> what tile sizing is allowed to consume (~5/8 of physical),
              leaving headroom for compiler scratch under the limit.
    """
    try:
        phys = int(pltpu.get_tpu_info().vmem_capacity_bytes)
    except Exception:
        phys = 64 << 20   # conservative fallback: v7x per-TensorCore VMEM
    return (phys * 3) // 4, (phys * 5) // 8


def _pick_batch_tile(B, S, x_itemsize, w_itemsize, vmem_budget):
    """Batch tile: byte-targeted, VMEM-clamped, multiple of 8.

    VMEM accounting:
      x:    2 * tb * S * x_itemsize   (double-buffered by the BlockSpec pipeline)
      W1:   1 * S * S * w_itemsize    (Buffered(1): constant block index)
      out:  2 * tb * 128 * 4          ((tb, 1) tile is lane-padded to 128)
      misc: ~2 MiB slack for the small params / compiler scratch
    """
    fixed = S * S * w_itemsize + (2 << 20)
    if fixed > vmem_budget:
        # TODO(synk): for very large S, tile W1's output (N) dim with a second
        # grid axis + an h accumulator instead of keeping all of W1 resident.
        raise ValueError(
            f"ValueHead W1 ({S}x{S}, {w_itemsize}B/elem) does not fit the "
            f"{vmem_budget >> 20} MiB VMEM budget; store weights in bf16 or "
            f"tile W1's N dimension.")

    per_row = 2 * S * x_itemsize + 2 * 128 * 4
    tb_vmem = (vmem_budget - fixed) // per_row
    tb_target = _X_TILE_TARGET_BYTES // (S * x_itemsize)
    tb = max(_SUBLANE, _round_dn(min(tb_vmem, tb_target), _SUBLANE))

    if B <= tb:
        return B   # single full block (block == array: exempt from (8,128))

    # Tiled path: keep the grid long enough that the DMA pipeline overlaps.
    steps = -(-B // tb)
    if steps < _MIN_GRID_STEPS:
        tb = max(_SUBLANE,
                 min(tb, _round_up(-(-B // _MIN_GRID_STEPS), _SUBLANE)))
    return tb


def _layer_norm(x, gamma, beta, use_layer_norm, affine):
    if not use_layer_norm:
        return x
    # One-pass statistics: both lane reductions issue back-to-back (XLU),
    # no serialized reduce -> subtract -> reduce chain.
    inv_n = 1.0 / x.shape[-1]
    s1 = jnp.sum(x, axis=-1, keepdims=True)
    s2 = jnp.sum(x * x, axis=-1, keepdims=True)
    mu = s1 * inv_n
    var = jnp.maximum(s2 * inv_n - mu * mu, 0.0)
    h = (x - mu) * lax.rsqrt(var + LN_EPS)
    if affine:
        h = h * gamma.astype(jnp.float32) + beta.astype(jnp.float32)
    return h


def value_head_kernel(
    x_ref,             # (tb, S)
    g1_ref, be1_ref,   # (1, S)  LayerNorm 1 affine params
    w1_ref, b1_ref,    # (S, S), (1, S)  Linear 1
    g2_ref, be2_ref,   # (1, S)  LayerNorm 2 affine params
    w2_ref, b2_ref,    # (1, S), (1, 1)  Linear 2 (weight stored as a row)
    o_ref,             # (tb, 1)
    *,
    use_layer_norm: bool,
    affine_layer_norm: bool,
):
    # Elementwise / LN work in f32 (VPU+EUP); only the MXU sees the weight dtype.
    x = x_ref[...].astype(jnp.float32)

    # --- layer 1: LN -> ReLU -> Linear(S -> S) on the MXU ---
    h = _layer_norm(x, g1_ref[...], be1_ref[...], use_layer_norm, affine_layer_norm)
    h = jnp.maximum(h, 0.0)
    h = jnp.dot(h.astype(w1_ref.dtype), w1_ref[...],
                preferred_element_type=jnp.float32)
    h = h + b1_ref[...].astype(jnp.float32)

    # --- layer 2: LN -> ReLU -> Linear(S -> 1) on the VPU/XLU ---
    h = _layer_norm(h, g2_ref[...], be2_ref[...], use_layer_norm, affine_layer_norm)
    h = jnp.maximum(h, 0.0)
    # Broadcast-multiply + lane reduction instead of an N=1 MXU matmul.
    v = jnp.sum(h * w2_ref[...].astype(jnp.float32), axis=-1, keepdims=True)
    v = v + b2_ref[...].astype(jnp.float32)

    o_ref[...] = v.astype(o_ref.dtype)


def value_head_forward(
    state_embedding,   # (..., S)
    params,
    *,
    use_layer_norm: bool = True,
    affine_layer_norm: bool = True,
    batch_tile: int | None = None,   # override for testing / tuning
):
    S = state_embedding.shape[-1]
    lead = state_embedding.shape[:-1]
    x2d = state_embedding.reshape(-1, S)
    B = x2d.shape[0]

    g1, be1, w1, b1, g2, be2, w2, b2 = params

    kernel = functools.partial(
        value_head_kernel,
        use_layer_norm=use_layer_norm,
        affine_layer_norm=affine_layer_norm,
    )

    vmem_limit, vmem_budget = _vmem_sizes()
    if batch_tile is None:
        tb = _pick_batch_tile(B, S, x2d.dtype.itemsize, w1.dtype.itemsize,
                              vmem_budget)
    else:
        tb = min(B, max(_SUBLANE, _round_dn(batch_tile, _SUBLANE)))
    grid = (pl.cdiv(B, tb),)   # ragged last tile handled by Pallas masking

    # Constant-index inputs: single pipeline buffer (second buffer is waste).
    def const(shape):
        return pl.BlockSpec(shape, lambda i: (0, 0), pipeline_mode=pl.Buffered(1))

    out = pl.pallas_call(
        kernel,
        out_shape=jax.ShapeDtypeStruct((B, 1), state_embedding.dtype),
        grid=grid,
        in_specs=[
            pl.BlockSpec((tb, S), lambda i: (i, 0)),   # x (pipelined over batch)
            const((1, S)), const((1, S)),              # LN1 gamma/beta
            const((S, S)), const((1, S)),              # W1, b1
            const((1, S)), const((1, S)),              # LN2 gamma/beta
            const((1, S)), const((1, 1)),              # w2 row, b2
        ],
        out_specs=pl.BlockSpec((tb, 1), lambda i: (i, 0)),
        compiler_params=pltpu.CompilerParams(
            # Batch tiles are independent -> shard across v7x's two TensorCores.
            dimension_semantics=("parallel",),
            vmem_limit_bytes=vmem_limit,
        ),
    )(x2d, g1, be1, w1, b1, g2, be2, w2, b2)

    return out.reshape(*lead, 1)


def init_value_head_params(key, stream_size, dtype=jnp.float32):
    """Deterministic synthetic init (shapes match nn.LayerNorm / nn.Linear).

    For large stream_size, pass dtype=jnp.bfloat16 to halve W1's HBM traffic
    and VMEM residency; the kernel accumulates the matmul in f32 regardless.
    """
    k1, k2, k3, k4 = jax.random.split(key, 4)
    S = stream_size
    # LayerNorm affine params (torch default: ones / zeros)
    g1 = jnp.ones((1, S), dtype)
    be1 = jnp.zeros((1, S), dtype)
    g2 = jnp.ones((1, S), dtype)
    be2 = jnp.zeros((1, S), dtype)
    # Linear 1: weight stored (in, out) == torch weight.T
    lim = 1.0 / jnp.sqrt(S)
    w1 = jax.random.uniform(k1, (S, S), dtype, -lim, lim)
    b1 = jax.random.uniform(k2, (1, S), dtype, -lim, lim)
    # Linear 2: weight stored as a (1, S) row == torch Linear(S, 1).weight as-is
    w2 = jax.random.uniform(k3, (1, S), dtype, -lim, lim)
    b2 = jax.random.uniform(k4, (1, 1), dtype, -lim, lim)
    return (g1, be1, w1, b1, g2, be2, w2, b2)


def _reference(x, params, use_layer_norm=True, affine_layer_norm=True):
    """Pure-JAX reference for a sanity check."""
    g1, be1, w1, b1, g2, be2, w2, b2 = params

    def ln(h, g, b):
        if not use_layer_norm:
            return h
        mu = jnp.mean(h, axis=-1, keepdims=True)
        var = jnp.mean((h - mu) ** 2, axis=-1, keepdims=True)
        h = (h - mu) / jnp.sqrt(var + LN_EPS)
        if affine_layer_norm:
            h = h * g + b
        return h

    h = jnp.maximum(ln(x, g1[0], be1[0]), 0.0)
    h = h @ w1 + b1[0]
    h = jnp.maximum(ln(h, g2[0], be2[0]), 0.0)
    return h @ w2[0][:, None] + b2[0]


if __name__ == "__main__":
    stream_size = 32

    key = jax.random.PRNGKey(0)
    kx, kp, kx2, kx3 = jax.random.split(key, 4)
    params = init_value_head_params(kp, stream_size)

    # Case 1: single full block (block == array), matches module defaults.
    x_small = jax.random.normal(kx, (2, 8, stream_size), jnp.float32)
    v_small = jax.block_until_ready(
        value_head_forward(x_small, params,
                           use_layer_norm=True, affine_layer_norm=True))
    assert v_small.shape == (2, 8, 1), v_small.shape
    ref_small = _reference(x_small, params)
    assert jnp.allclose(v_small, ref_small, atol=1e-4, rtol=1e-4), (
        float(jnp.max(jnp.abs(v_small - ref_small))))

    # Case 2: default (byte-targeted) tiling.  With S=32 the ~2 MiB target
    # makes B=1200 a single full block instead of a ragged 2-step grid.
    x_big = jax.random.normal(kx2, (3, 400, stream_size), jnp.float32)
    v_big = jax.block_until_ready(value_head_forward(x_big, params))
    assert v_big.shape == (3, 400, 1), v_big.shape
    ref_big = _reference(x_big, params)
    assert jnp.allclose(v_big, ref_big, atol=1e-4, rtol=1e-4), (
        float(jnp.max(jnp.abs(v_big - ref_big))))

    # Case 3: forced small batch tile to exercise the multi-step pipelined grid
    # and the ragged last block (B=200, tb=64 -> grid=(4,), last block 8 rows).
    x_rag = jax.random.normal(kx3, (5, 40, stream_size), jnp.float32)
    v_rag = jax.block_until_ready(
        value_head_forward(x_rag, params, batch_tile=64))
    assert v_rag.shape == (5, 40, 1), v_rag.shape
    ref_rag = _reference(x_rag, params)
    assert jnp.allclose(v_rag, ref_rag, atol=1e-4, rtol=1e-4), (
        float(jnp.max(jnp.abs(v_rag - ref_rag))))

    print("KERNEL_OK")
</pallas_src>

<mosaic_0001>
module attributes {stable_mosaic.version = 11 : i64} {
  func.func @value_head_kernel(%arg0: i32, %arg1: memref<16x32xf32, #tpu.memory_space<vmem>>, %arg2: memref<1x32xf32, #tpu.memory_space<vmem>>, %arg3: memref<1x32xf32, #tpu.memory_space<vmem>>, %arg4: memref<32x32xf32, #tpu.memory_space<vmem>>, %arg5: memref<1x32xf32, #tpu.memory_space<vmem>>, %arg6: memref<1x32xf32, #tpu.memory_space<vmem>>, %arg7: memref<1x32xf32, #tpu.memory_space<vmem>>, %arg8: memref<1x32xf32, #tpu.memory_space<vmem>>, %arg9: memref<1x1xf32, #tpu.memory_space<vmem>>, %arg10: memref<16x1xf32, #tpu.memory_space<vmem>>) attributes {dimension_semantics = [#tpu.dimension_semantics<parallel>], iteration_bounds = array<i64: 1>, scalar_prefetch = 0 : i64, scratch_operands = 0 : i64, tpu.core_type = #tpu.core_type<tc>, window_params = [{transform_indices = @transform_0, window_bounds = array<i64: 16, 32>}, {pipeline_mode = #tpu.pipeline_mode<synchronous>, transform_indices = @transform_1, window_bounds = array<i64: 1, 32>}, {pipeline_mode = #tpu.pipeline_mode<synchronous>, transform_indices = @transform_2, window_bounds = array<i64: 1, 32>}, {pipeline_mode = #tpu.pipeline_mode<synchronous>, transform_indices = @transform_3, window_bounds = array<i64: 32, 32>}, {pipeline_mode = #tpu.pipeline_mode<synchronous>, transform_indices = @transform_4, window_bounds = array<i64: 1, 32>}, {pipeline_mode = #tpu.pipeline_mode<synchronous>, transform_indices = @transform_5, window_bounds = array<i64: 1, 32>}, {pipeline_mode = #tpu.pipeline_mode<synchronous>, transform_indices = @transform_6, window_bounds = array<i64: 1, 32>}, {pipeline_mode = #tpu.pipeline_mode<synchronous>, transform_indices = @transform_7, window_bounds = array<i64: 1, 32>}, {pipeline_mode = #tpu.pipeline_mode<synchronous>, transform_indices = @transform_8, window_bounds = array<i64: 1, 1>}, {transform_indices = @transform_9, window_bounds = array<i64: 16, 1>}]} {
    %c0 = arith.constant 0 : index
    %c0_0 = arith.constant 0 : index
    %0 = vector.load %arg1[%c0, %c0_0] : memref<16x32xf32, #tpu.memory_space<vmem>>, vector<16x32xf32>
    %c0_1 = arith.constant 0 : index
    %c0_2 = arith.constant 0 : index
    %1 = vector.load %arg2[%c0_1, %c0_2] : memref<1x32xf32, #tpu.memory_space<vmem>>, vector<1x32xf32>
    %c0_3 = arith.constant 0 : index
    %c0_4 = arith.constant 0 : index
    %2 = vector.load %arg3[%c0_3, %c0_4] : memref<1x32xf32, #tpu.memory_space<vmem>>, vector<1x32xf32>
    %cst = arith.constant dense<0.000000e+00> : vector<16xf32>
    %3 = vector.multi_reduction <add>, %0, %cst [1] : vector<16x32xf32> to vector<16xf32>
    %4 = vector.shape_cast %3 : vector<16xf32> to vector<16x1xf32>
    %5 = arith.mulf %0, %0 : vector<16x32xf32>
    %cst_5 = arith.constant dense<0.000000e+00> : vector<16xf32>
    %6 = vector.multi_reduction <add>, %5, %cst_5 [1] : vector<16x32xf32> to vector<16xf32>
    %7 = vector.shape_cast %6 : vector<16xf32> to vector<16x1xf32>
    %cst_6 = arith.constant 3.125000e-02 : f32
    %8 = vector.broadcast %cst_6 : f32 to vector<16x1xf32>
    %9 = arith.mulf %4, %8 : vector<16x1xf32>
    %cst_7 = arith.constant 3.125000e-02 : f32
    %10 = vector.broadcast %cst_7 : f32 to vector<16x1xf32>
    %11 = arith.mulf %7, %10 : vector<16x1xf32>
    %12 = arith.mulf %9, %9 : vector<16x1xf32>
    %13 = arith.subf %11, %12 : vector<16x1xf32>
    %cst_8 = arith.constant 0.000000e+00 : f32
    %14 = vector.broadcast %cst_8 : f32 to vector<16x1xf32>
    %15 = arith.maximumf %13, %14 : vector<16x1xf32>
    %16 = vector.broadcast %9 : vector<16x1xf32> to vector<16x32xf32>
    %17 = arith.subf %0, %16 : vector<16x32xf32>
    %cst_9 = arith.constant 9.99999974E-6 : f32
    %18 = vector.broadcast %cst_9 : f32 to vector<16x1xf32>
    %19 = arith.addf %15, %18 : vector<16x1xf32>
    %20 = math.rsqrt %19 : vector<16x1xf32>
    %21 = vector.broadcast %20 : vector<16x1xf32> to vector<16x32xf32>
    %22 = arith.mulf %17, %21 : vector<16x32xf32>
    %23 = vector.broadcast %1 : vector<1x32xf32> to vector<16x32xf32>
    %24 = arith.mulf %22, %23 : vector<16x32xf32>
    %25 = vector.broadcast %2 : vector<1x32xf32> to vector<16x32xf32>
    %26 = arith.addf %24, %25 : vector<16x32xf32>
    %cst_10 = arith.constant 0.000000e+00 : f32
    %27 = vector.broadcast %cst_10 : f32 to vector<16x32xf32>
    %28 = arith.maximumf %26, %27 : vector<16x32xf32>
    %c0_11 = arith.constant 0 : index
    %c0_12 = arith.constant 0 : index
    %29 = vector.load %arg4[%c0_11, %c0_12] : memref<32x32xf32, #tpu.memory_space<vmem>>, vector<32x32xf32>
    %cst_13 = arith.constant dense<0.000000e+00> : vector<16x32xf32>
    %30 = tpu.matmul %28, %29, %cst_13 {dimension_numbers = #tpu.dot_dimension_numbers<[1], [0], [0], [1], [0, 0, 1, 1], [], []>} : vector<16x32xf32>, vector<32x32xf32>, vector<16x32xf32> -> vector<16x32xf32>
    %c0_14 = arith.constant 0 : index
    %c0_15 = arith.constant 0 : index
    %31 = vector.load %arg5[%c0_14, %c0_15] : memref<1x32xf32, #tpu.memory_space<vmem>>, vector<1x32xf32>
    %32 = vector.broadcast %31 : vector<1x32xf32> to vector<16x32xf32>
    %33 = arith.addf %30, %32 : vector<16x32xf32>
    %c0_16 = arith.constant 0 : index
    %c0_17 = arith.constant 0 : index
    %34 = vector.load %arg6[%c0_16, %c0_17] : memref<1x32xf32, #tpu.memory_space<vmem>>, vector<1x32xf32>
    %c0_18 = arith.constant 0 : index
    %c0_19 = arith.constant 0 : index
    %35 = vector.load %arg7[%c0_18, %c0_19] : memref<1x32xf32, #tpu.memory_space<vmem>>, vector<1x32xf32>
    %cst_20 = arith.constant dense<0.000000e+00> : vector<16xf32>
    %36 = vector.multi_reduction <add>, %33, %cst_20 [1] : vector<16x32xf32> to vector<16xf32>
    %37 = vector.shape_cast %36 : vector<16xf32> to vector<16x1xf32>
    %38 = arith.mulf %33, %33 : vector<16x32xf32>
    %cst_21 = arith.constant dense<0.000000e+00> : vector<16xf32>
    %39 = vector.multi_reduction <add>, %38, %cst_21 [1] : vector<16x32xf32> to vector<16xf32>
    %40 = vector.shape_cast %39 : vector<16xf32> to vector<16x1xf32>
    %cst_22 = arith.constant 3.125000e-02 : f32
    %41 = vector.broadcast %cst_22 : f32 to vector<16x1xf32>
    %42 = arith.mulf %37, %41 : vector<16x1xf32>
    %cst_23 = arith.constant 3.125000e-02 : f32
    %43 = vector.broadcast %cst_23 : f32 to vector<16x1xf32>
    %44 = arith.mulf %40, %43 : vector<16x1xf32>
    %45 = arith.mulf %42, %42 : vector<16x1xf32>
    %46 = arith.subf %44, %45 : vector<16x1xf32>
    %cst_24 = arith.constant 0.000000e+00 : f32
    %47 = vector.broadcast %cst_24 : f32 to vector<16x1xf32>
    %48 = arith.maximumf %46, %47 : vector<16x1xf32>
    %49 = vector.broadcast %42 : vector<16x1xf32> to vector<16x32xf32>
    %50 = arith.subf %33, %49 : vector<16x32xf32>
    %cst_25 = arith.constant 9.99999974E-6 : f32
    %51 = vector.broadcast %cst_25 : f32 to vector<16x1xf32>
    %52 = arith.addf %48, %51 : vector<16x1xf32>
    %53 = math.rsqrt %52 : vector<16x1xf32>
    %54 = vector.broadcast %53 : vector<16x1xf32> to vector<16x32xf32>
    %55 = arith.mulf %50, %54 : vector<16x32xf32>
    %56 = vector.broadcast %34 : vector<1x32xf32> to vector<16x32xf32>
    %57 = arith.mulf %55, %56 : vector<16x32xf32>
    %58 = vector.broadcast %35 : vector<1x32xf32> to vector<16x32xf32>
    %59 = arith.addf %57, %58 : vector<16x32xf32>
    %cst_26 = arith.constant 0.000000e+00 : f32
    %60 = vector.broadcast %cst_26 : f32 to vector<16x32xf32>
    %61 = arith.maximumf %59, %60 : vector<16x32xf32>
    %c0_27 = arith.constant 0 : index
    %c0_28 = arith.constant 0 : index
    %62 = vector.load %arg8[%c0_27, %c0_28] : memref<1x32xf32, #tpu.memory_space<vmem>>, vector<1x32xf32>
    %63 = vector.broadcast %62 : vector<1x32xf32> to vector<16x32xf32>
    %64 = arith.mulf %61, %63 : vector<16x32xf32>
    %cst_29 = arith.constant dense<0.000000e+00> : vector<16xf32>
    %65 = vector.multi_reduction <add>, %64, %cst_29 [1] : vector<16x32xf32> to vector<16xf32>
    %66 = vector.shape_cast %65 : vector<16xf32> to vector<16x1xf32>
    %c0_30 = arith.constant 0 : index
    %c0_31 = arith.constant 0 : index
    %67 = vector.load %arg9[%c0_30, %c0_31] : memref<1x1xf32, #tpu.memory_space<vmem>>, vector<1x1xf32>
    %68 = vector.broadcast %67 : vector<1x1xf32> to vector<16x1xf32>
    %69 = arith.addf %66, %68 : vector<16x1xf32>
    %c0_32 = arith.constant 0 : index
    %c0_33 = arith.constant 0 : index
    %70 = vector.load %arg10[%c0_32, %c0_33] : memref<16x1xf32, #tpu.memory_space<vmem>>, vector<16x1xf32>
    tpu.vector_store %arg10[%c0_32, %c0_33], %69 {strides = array<i32>} : memref<16x1xf32, #tpu.memory_space<vmem>>, vector<16x1xf32>,
    return
  }
  func.func @transform_0(%arg0: i32) -> (i32, i32) {
    %c0_i32 = arith.constant 0 : i32
    %c0_i32_0 = arith.constant 0 : i32
    return %arg0, %c0_i32 : i32, i32
  }
  func.func @transform_1(%arg0: i32) -> (i32, i32) {
    %c0_i32 = arith.constant 0 : i32
    %c0_i32_0 = arith.constant 0 : i32
    %c0_i32_1 = arith.constant 0 : i32
    return %c0_i32, %c0_i32_0 : i32, i32
  }
  func.func @transform_2(%arg0: i32) -> (i32, i32) {
    %c0_i32 = arith.constant 0 : i32
    %c0_i32_0 = arith.constant 0 : i32
    %c0_i32_1 = arith.constant 0 : i32
    return %c0_i32, %c0_i32_0 : i32, i32
  }
  func.func @transform_3(%arg0: i32) -> (i32, i32) {
    %c0_i32 = arith.constant 0 : i32
    %c0_i32_0 = arith.constant 0 : i32
    %c0_i32_1 = arith.constant 0 : i32
    return %c0_i32, %c0_i32_0 : i32, i32
  }
  func.func @transform_4(%arg0: i32) -> (i32, i32) {
    %c0_i32 = arith.constant 0 : i32
    %c0_i32_0 = arith.constant 0 : i32
    %c0_i32_1 = arith.constant 0 : i32
    return %c0_i32, %c0_i32_0 : i32, i32
  }
  func.func @transform_5(%arg0: i32) -> (i32, i32) {
    %c0_i32 = arith.constant 0 : i32
    %c0_i32_0 = arith.constant 0 : i32
    %c0_i32_1 = arith.constant 0 : i32
    return %c0_i32, %c0_i32_0 : i32, i32
  }
  func.func @transform_6(%arg0: i32) -> (i32, i32) {
    %c0_i32 = arith.constant 0 : i32
    %c0_i32_0 = arith.constant 0 : i32
    %c0_i32_1 = arith.constant 0 : i32
    return %c0_i32, %c0_i32_0 : i32, i32
  }
  func.func @transform_7(%arg0: i32) -> (i32, i32) {
    %c0_i32 = arith.constant 0 : i32
    %c0_i32_0 = arith.constant 0 : i32
    %c0_i32_1 = arith.constant 0 : i32
    return %c0_i32, %c0_i32_0 : i32, i32
  }
  func.func @transform_8(%arg0: i32) -> (i32, i32) {
    %c0_i32 = arith.constant 0 : i32
    %c0_i32_0 = arith.constant 0 : i32
    %c0_i32_1 = arith.constant 0 : i32
    return %c0_i32, %c0_i32_0 : i32, i32
  }
  func.func @transform_9(%arg0: i32) -> (i32, i32) {
    %c0_i32 = arith.constant 0 : i32
    %c0_i32_0 = arith.constant 0 : i32
    return %arg0, %c0_i32 : i32, i32
  }
}

</mosaic_0001>

<llo_original>
// kernel: tpu_custom_call.1
$region0: #{tpu_custom_call.1}
  #allocation0 [shape = 'u32[]', space=smem, size = 0x4, offset = 0x4, fixed_abs, tag = 'smem constant byte address 0x4 - core index']
  #allocation1 [shape = 'u32[144,128]{1,0:T(1,128)}', space=vmem, size = 0x12000, scoped, tag = 'internal scratch']
  #allocation2 [shape = 'f32[1,1]{1,0:T(1,128)S(1)}', space=vmem, size = 0x200, scoped, tag = 'scoped memory for tpu_custom_call.1']
  %s0 = inlined_call_operand.hbm [shape: f32[16,32], index: 0, kind: input, shape index: {}]
  %s1 = inlined_call_operand.vmem [shape: f32[1,32], index: 1, kind: input, shape index: {}]
  %s2 = inlined_call_operand.vmem [shape: f32[1,32], index: 2, kind: input, shape index: {}]
  %s3 = inlined_call_operand.hbm [shape: f32[32,32], index: 3, kind: input, shape index: {}]
  %s4 = inlined_call_operand.vmem [shape: f32[1,32], index: 4, kind: input, shape index: {}]
  %s5 = inlined_call_operand.vmem [shape: f32[1,32], index: 5, kind: input, shape index: {}]
  %s6 = inlined_call_operand.vmem [shape: f32[1,32], index: 6, kind: input, shape index: {}]
  %s7 = inlined_call_operand.vmem [shape: f32[1,32], index: 7, kind: input, shape index: {}]
  %s8 = inlined_call_operand.<no memory space> [shape: f32[1,1], index: 8, kind: input, shape index: {}]
  %s9 = inlined_call_operand.vmem [shape: f32[16,1], index: 9, kind: output, shape index: {}]
  %s10 = sld [smem:[#allocation0]]
  $region54: #{tpu_custom_call.1} parent=0
    _
  %s12 = ssub.s32 1, %s10
  %s13 = scalar_select 0, %s12, %s10
  %v14 = vstv %s8
  %15 = vst [vmem:[#allocation2] sm:$0x1] %v14
  $region1: #{tpu_custom_call.1} parent=0
    #allocation3 [shape = 'u8[8192]{0}', space=vmem, size = 0x2000, scoped, tag = 'input window, operand 0, single buffered']
    #allocation4 [shape = 's32[1]{0}', space=sflag, size = 0x4, scoped, tag = 'scoped memory for tpu_custom_call.1']
    #allocation5 [shape = 'u8[16384]{0}', space=vmem, size = 0x4000, scoped, tag = 'input window, operand 3, single buffered']
    #allocation6 [shape = 's32[1]{0}', space=sflag, size = 0x4, scoped, tag = 'scoped memory for tpu_custom_call.1']
    %16 = vsyncpa [#allocation4], 0
    %17 = vsyncpa [#allocation6], 0
    // Predicated region
    $region2: #{tpu_custom_call.1} parent=1 // pred_check
      _
    $region3: #{tpu_custom_call.1} parent=1 // pred_check_branch
      %19 = sbr.rel (0) target = $region5
    $region4: #{tpu_custom_call.1} parent=1 // pred_region
      %s21 = ssub.s32 256, 256
      %22 = vsyncadd [#allocation4], %s21
      %s23 = sshll.u32 [#allocation3], 4
      %s24 = int_to_ptr.vmem [resolvable:$true] %s23
      %29 = dma.hbm_to_vmem [thread:$0]  %s0, 256, %s24, [#allocation4], 128, 128, 8
    $region5: #{tpu_custom_call.1} parent=1 // pred_fallthru
      _
    // Predicated region
    $region6: #{tpu_custom_call.1} parent=1 // pred_check
      _
    $region7: #{tpu_custom_call.1} parent=1 // pred_check_branch
      %31 = sbr.rel (0) target = $region9
    $region8: #{tpu_custom_call.1} parent=1 // pred_region
      _
    $region9: #{tpu_custom_call.1} parent=1 // pred_fallthru
      _
    // Predicated region
    $region10: #{tpu_custom_call.1} parent=1 // pred_check
      _
    $region11: #{tpu_custom_call.1} parent=1 // pred_check_branch
      %33 = sbr.rel (0) target = $region13
    $region12: #{tpu_custom_call.1} parent=1 // pred_region
      _
    $region13: #{tpu_custom_call.1} parent=1 // pred_fallthru
      _
    // Predicated region
    $region14: #{tpu_custom_call.1} parent=1 // pred_check
      _
    $region15: #{tpu_custom_call.1} parent=1 // pred_check_branch
      %35 = sbr.rel (0) target = $region17
    $region16: #{tpu_custom_call.1} parent=1 // pred_region
      %s37 = ssub.s32 512, 512
      %38 = vsyncadd [#allocation6], %s37
      %s39 = sshll.u32 [#allocation5], 4
      %s40 = int_to_ptr.vmem [resolvable:$true] %s39
      %45 = dma.hbm_to_vmem [thread:$0]  %s3, 512, %s40, [#allocation6], 128, 128, 8
    $region17: #{tpu_custom_call.1} parent=1 // pred_fallthru
      _
    // Predicated region
    $region18: #{tpu_custom_call.1} parent=1 // pred_check
      _
    $region19: #{tpu_custom_call.1} parent=1 // pred_check_branch
      %47 = sbr.rel (0) target = $region21
    $region20: #{tpu_custom_call.1} parent=1 // pred_region
      _
    $region21: #{tpu_custom_call.1} parent=1 // pred_fallthru
      _
    // Predicated region
    $region22: #{tpu_custom_call.1} parent=1 // pred_check
      _
    $region23: #{tpu_custom_call.1} parent=1 // pred_check_branch
      %49 = sbr.rel (0) target = $region25
    $region24: #{tpu_custom_call.1} parent=1 // pred_region
      _
    $region25: #{tpu_custom_call.1} parent=1 // pred_fallthru
      _
    // Predicated region
    $region26: #{tpu_custom_call.1} parent=1 // pred_check
      _
    $region27: #{tpu_custom_call.1} parent=1 // pred_check_branch
      %51 = sbr.rel (0) target = $region29
    $region28: #{tpu_custom_call.1} parent=1 // pred_region
      _
    $region29: #{tpu_custom_call.1} parent=1 // pred_fallthru
      _
    // Predicated region
    $region30: #{tpu_custom_call.1} parent=1 // pred_check
      _
    $region31: #{tpu_custom_call.1} parent=1 // pred_check_branch
      %53 = sbr.rel (0) target = $region33
    $region32: #{tpu_custom_call.1} parent=1 // pred_region
      _
    $region33: #{tpu_custom_call.1} parent=1 // pred_fallthru
      _
    // Predicated region
    $region34: #{tpu_custom_call.1} parent=1 // pred_check
      _
    $region35: #{tpu_custom_call.1} parent=1 // pred_check_branch
      %55 = sbr.rel (0) target = $region37
    $region36: #{tpu_custom_call.1} parent=1 // pred_region
      _
    $region37: #{tpu_custom_call.1} parent=1 // pred_fallthru
      _
    // Predicated region
    $region38: #{tpu_custom_call.1} parent=1 // pred_check
      _
    $region39: #{tpu_custom_call.1} parent=1 // pred_check_branch
      %57 = sbr.rel (0) target = $region41
    $region40: #{tpu_custom_call.1} parent=1 // pred_region
      %58 = dma.done [#allocation4], 256
    $region41: #{tpu_custom_call.1} parent=1 // pred_fallthru
      _
    // Predicated region
    $region42: #{tpu_custom_call.1} parent=1 // pred_check
      _
    $region43: #{tpu_custom_call.1} parent=1 // pred_check_branch
      %60 = sbr.rel (0) target = $region45
    $region44: #{tpu_custom_call.1} parent=1 // pred_region
      %61 = dma.done [#allocation6], 512
    $region45: #{tpu_custom_call.1} parent=1 // pred_fallthru
      _
    %v62 = vld [vmem:[#allocation3] sm:$0xff]
    %v63 = vld [vmem:[#allocation3 + $0x8] sm:$0xff]
    %v64 = vld [vmem:[%s1] sm:$0x1]
    %v65 = vld [vmem:[%s2] sm:$0x1]
    %vm66 = vcmask 261120
    %v67 = vsel %vm66, %v62, 0.0
    %68 = vadd.xlane.f32.xlu0 %v67
    %v69 = vpop.xlane.xlu0 %68
    %v70 = vsel %vm66, %v63, 0.0
    %71 = vadd.xlane.f32.xlu0 %v70
    %v72 = vpop.xlane.xlu0 %71
    %v73 = vmul.f32 %v62, %v62
    %v74 = vmul.f32 %v63, %v63
    %v75 = vsel %vm66, %v73, 0.0
    %76 = vadd.xlane.f32.xlu0 %v75
    %v77 = vpop.xlane.xlu0 %76
    %v78 = vsel %vm66, %v74, 0.0
    %79 = vadd.xlane.f32.xlu0 %v78
    %v80 = vpop.xlane.xlu0 %79
    %v81 = vmul.f32 %v69, 0.03125
    %v82 = vmul.f32 %v72, 0.03125
    %v83 = vmul.f32 %v77, 0.03125
    %v84 = vmul.f32 %v80, 0.03125
    %v85 = vmul.f32 %v81, %v81
    %v86 = vmul.f32 %v82, %v82
    %v87 = vsub.f32 %v83, %v85
    %v88 = vsub.f32 %v84, %v86
    %v89 = vmax.f32 %v87, 0.0
    %v90 = vmax.f32 %v88, 0.0
    %v91 = vsub.f32 %v62, %v81
    %v92 = vsub.f32 %v63, %v82
    %v93 = vadd.f32 %v89, 1e-05
    %v94 = vadd.f32 %v90, 1e-05
    %v95 = vrsqrt.pop %v93
    %v96 = vrsqrt.pop %v94
    %v97 = vmul.f32 %v91, %v95
    %v98 = vmul.f32 %v92, %v96
    %v100 = vlaneseq
    %v101 = vshrl.u32 %v100, 7
    %v102 = vsub.s32 0, %v101
    %v103 = vrot.slane %v64, %v102
    %v105 = vmul.f32 %v97, %v103
    %v106 = vmul.f32 %v98, %v103
    %v108 = vlaneseq
    %v109 = vshrl.u32 %v108, 7
    %v110 = vsub.s32 0, %v109
    %v111 = vrot.slane %v65, %v110
    %v113 = vadd.f32 %v105, %v111
    %v114 = vadd.f32 %v106, %v111
    %v115 = vmax.f32 %v113, 0.0
    %v116 = vmax.f32 %v114, 0.0
    %v117 = vld [vmem:[#allocation5] sm:$0xff]
    %v118 = vld [vmem:[#allocation5 + $0x8] sm:$0xff]
    %v119 = vld [vmem:[#allocation5 + $0x10] sm:$0xff]
    %v120 = vld [vmem:[#allocation5 + $0x18] sm:$0xff]
    %v121 = vld [vmem:[%s4] sm:$0x1]
    %v123 = vlaneseq
    %v124 = vshrl.u32 %v123, 7
    %v125 = vsub.s32 0, %v124
    %v126 = vrot.slane %v121, %v125
    %v129 = vsel %vm66, %v115, 0
    %v132 = vsel %vm66, %v116, 0
    %134 = vmatprep.subr.mxu0 0.0
    %135 = vmatpush1.msra.mxu0 0.0
    %136 = vmatprep.subr.mxu0 0.0
    %137 = vmatpush1.msra.mxu0 0.0
    %138 = vmatprep.subr.mxu0 0.0
    %139 = vmatpush1.msra.mxu0 0.0
    %140 = vmatprep.subr.mxu0 0.0
    %141 = vmatpush1.msra.mxu0 0.0
    %142 = vmatprep.subr.mxu0 0.0
    %143 = vmatpush1.msra.mxu0 0.0
    %144 = vmatprep.subr.mxu0 0.0
    %145 = vmatpush1.msra.mxu0 0.0
    %146 = vmatprep.subr.mxu0 0.0
    %147 = vmatpush1.msra.mxu0 0.0
    %148 = vmatprep.subr.mxu0 0.0
    %149 = vmatpush1.msra.mxu0 0.0
    %150 = vmatprep.subr.mxu0 0.0
    %151 = vmatpush1.msra.mxu0 0.0
    %152 = vmatprep.subr.mxu0 0.0
    %153 = vmatpush1.msra.mxu0 0.0
    %154 = vmatprep.subr.mxu0 0.0
    %155 = vmatpush1.msra.mxu0 0.0
    %156 = vmatprep.subr.mxu0 0.0
    %157 = vmatpush1.msra.mxu0 0.0
    %158 = vmatprep.subr.mxu0 0.0
    %159 = vmatpush1.msra.mxu0 %v120
    %160 = vmatprep.subr.mxu0 0.0
    %161 = vmatpush1.msra.mxu0 %v119
    %162 = vmatprep.subr.mxu0 0.0
    %163 = vmatpush1.msra.mxu0 %v118
    %164 = vmatprep.subr.mxu0 0.0
    %165 = vmatpush1.msra.mxu0 %v117
    %166 = vmatprep.subr.mxu0 0.0
    %167 = vmatpush2.msra.mxu0 0.0
    %168 = vmatprep.subr.mxu0 0.0
    %169 = vmatpush2.msra.mxu0 0.0
    %170 = vmatprep.subr.mxu0 0.0
    %171 = vmatpush2.msra.mxu0 0.0
    %172 = vmatprep.subr.mxu0 0.0
    %173 = vmatpush2.msra.mxu0 0.0
    %174 = vmatprep.subr.mxu0 0.0
    %175 = vmatpush2.msra.mxu0 0.0
    %176 = vmatprep.subr.mxu0 0.0
    %177 = vmatpush2.msra.mxu0 0.0
    %178 = vmatprep.subr.mxu0 0.0
    %179 = vmatpush2.msra.mxu0 0.0
    %180 = vmatprep.subr.mxu0 0.0
    %181 = vmatpush2.msra.mxu0 0.0
    %182 = vmatprep.subr.mxu0 0.0
    %183 = vmatpush2.msra.mxu0 0.0
    %184 = vmatprep.subr.mxu0 0.0
    %185 = vmatpush2.msra.mxu0 0.0
    %186 = vmatprep.subr.mxu0 0.0
    %187 = vmatpush2.msra.mxu0 0.0
    %188 = vmatprep.subr.mxu0 0.0
    %189 = vmatpush2.msra.mxu0 0.0
    %190 = vmatprep.subr.mxu0 0.0
    %191 = vmatpush2.msra.mxu0 0.0
    %192 = vmatprep.subr.mxu0 0.0
    %193 = vmatpush2.msra.mxu0 0.0
    %194 = vmatprep.subr.mxu0 0.0
    %195 = vmatpush2.msra.mxu0 0.0
    %196 = vmatprep.subr.mxu0 0.0
    %197 = vmatpush2.msra.mxu0 0.0
    %198 = vmatprep.mubr.f32.mxu0 0.0
    %199 = vmatmul.mubr.f32.gmra.mxu0 %v129
    %v200 = vpop.f32.mrf.mxu0
    %v201 = vadd.f32 %v126, %v200
    %v202 = vpop.f32.mrf.mxu0
    %203 = vmatprep.mubr.f32.mxu0 0.0
    %204 = vmatmul.mubr.f32.gmra.mxu0 %v132
    %v205 = vpop.f32.mrf.mxu0
    %v206 = vadd.f32 %v126, %v205
    %v207 = vpop.f32.mrf.mxu0
    %208 = vdwg.mxu0
    %v209 = vld [vmem:[%s5] sm:$0x1]
    %v210 = vld [vmem:[%s6] sm:$0x1]
    %v211 = vsel %vm66, %v201, 0.0
    %212 = vadd.xlane.f32.xlu0 %v211
    %v213 = vpop.xlane.xlu0 %212
    %v214 = vsel %vm66, %v206, 0.0
    %215 = vadd.xlane.f32.xlu0 %v214
    %v216 = vpop.xlane.xlu0 %215
    %v217 = vmul.f32 %v201, %v201
    %v218 = vmul.f32 %v206, %v206
    %v219 = vsel %vm66, %v217, 0.0
    %220 = vadd.xlane.f32.xlu0 %v219
    %v221 = vpop.xlane.xlu0 %220
    %v222 = vsel %vm66, %v218, 0.0
    %223 = vadd.xlane.f32.xlu0 %v222
    %v224 = vpop.xlane.xlu0 %223
    %v225 = vmul.f32 %v213, 0.03125
    %v226 = vmul.f32 %v216, 0.03125
    %v227 = vmul.f32 %v221, 0.03125
    %v228 = vmul.f32 %v224, 0.03125
    %v229 = vmul.f32 %v225, %v225
    %v230 = vmul.f32 %v226, %v226
    %v231 = vsub.f32 %v227, %v229
    %v232 = vsub.f32 %v228, %v230
    %v233 = vmax.f32 %v231, 0.0
    %v234 = vmax.f32 %v232, 0.0
    %v235 = vsub.f32 %v201, %v225
    %v236 = vsub.f32 %v206, %v226
    %v237 = vadd.f32 %v233, 1e-05
    %v238 = vadd.f32 %v234, 1e-05
    %v239 = vrsqrt.pop %v237
    %v240 = vrsqrt.pop %v238
    %v241 = vmul.f32 %v235, %v239
    %v242 = vmul.f32 %v236, %v240
    %v244 = vlaneseq
    %v245 = vshrl.u32 %v244, 7
    %v246 = vsub.s32 0, %v245
    %v247 = vrot.slane %v209, %v246
    %v249 = vmul.f32 %v241, %v247
    %v250 = vmul.f32 %v242, %v247
    %v252 = vlaneseq
    %v253 = vshrl.u32 %v252, 7
    %v254 = vsub.s32 0, %v253
    %v255 = vrot.slane %v210, %v254
    %v257 = vadd.f32 %v249, %v255
    %v258 = vadd.f32 %v250, %v255
    %v259 = vmax.f32 %v257, 0.0
    %v260 = vmax.f32 %v258, 0.0
    %v261 = vld [vmem:[%s7] sm:$0x1]
    %v263 = vlaneseq
    %v264 = vshrl.u32 %v263, 7
    %v265 = vsub.s32 0, %v264
    %v266 = vrot.slane %v261, %v265
    %v268 = vmul.f32 %v259, %v266
    %v269 = vmul.f32 %v260, %v266
    %v270 = vsel %vm66, %v268, 0.0
    %271 = vadd.xlane.f32.xlu0 %v270
    %v272 = vpop.xlane.xlu0 %271
    %v273 = vsel %vm66, %v269, 0.0
    %274 = vadd.xlane.f32.xlu0 %v273
    %v275 = vpop.xlane.xlu0 %274
    %v276 = vld [vmem:[#allocation2] sm:$0x1]
    %v278 = vlaneseq
    %v279 = vshrl.u32 %v278, 7
    %v280 = vsub.s32 0, %v279
    %v281 = vrot.slane %v276, %v280
    %v283 = vadd.f32 %v272, %v281
    %v284 = vadd.f32 %v275, %v281
    %vm285 = vcmask 7168
    %286 = vst.msk [vmem:[%s9] sm:$0xff] %vm285, %v283
    %287 = vst.msk [vmem:[%s9 + $0x8] sm:$0xff] %vm285, %v284
    // Predicated region
    $region46: #{tpu_custom_call.1} parent=1 // pred_check
      _
    $region47: #{tpu_custom_call.1} parent=1 // pred_check_branch
      %289 = sbr.rel (0) target = $region49
    $region48: #{tpu_custom_call.1} parent=1 // pred_region
      _
    $region49: #{tpu_custom_call.1} parent=1 // pred_fallthru
      _
    // Predicated region
    $region50: #{tpu_custom_call.1} parent=1 // pred_check
      _
    $region51: #{tpu_custom_call.1} parent=1 // pred_check_branch
      %291 = sbr.rel (0) target = $region53
    $region52: #{tpu_custom_call.1} parent=1 // pred_region
      _
    $region53: #{tpu_custom_call.1} parent=1 // pred_fallthru
      _
    %292 = vsyncpa [#allocation4], 1
    %293 = vsyncpa [#allocation6], 1

</llo_original>
